<compile_context>
chip_gen: v7x
topology: tpu7x:2x2x1
jax: 0.10.0
libtpu: 0.0.40
codegen_flags: <defaults>
</compile_context>

<pallas_src>
import functools

import jax
import jax.numpy as jnp
from jax import lax
from jax.experimental import pallas as pl
from jax.experimental.pallas import tpu as pltpu


# ---------------------------------------------------------------------------
# Phase 1 / Phase 3: simple dense kernel  out = x @ w + b  (single VMEM block)
# ---------------------------------------------------------------------------
def _dense_kernel(x_ref, w_ref, b_ref, o_ref):
    o_ref[...] = (
        jnp.dot(x_ref[...], w_ref[...], preferred_element_type=jnp.float32)
        + b_ref[...]
    ).astype(o_ref.dtype)


def _dense(x2d, w, b2d, out_dtype=jnp.float32):
    """out[M, N] = x2d[M, K] @ w[K, N] + b2d[1, N], f32 accumulate."""
    M, _ = x2d.shape
    _, N = w.shape
    return pl.pallas_call(
        _dense_kernel,
        out_shape=jax.ShapeDtypeStruct((M, N), out_dtype),
    )(x2d, w, b2d)


# ---------------------------------------------------------------------------
# Phase 2: blocked-time LSTM recurrence (only h @ W_hh^T per timestep)
# ---------------------------------------------------------------------------
def _lstm_recurrence_kernel(gx_ref, whh_ref, h0_ref, c0_ref,
                            hseq_ref, hn_ref, cn_ref,
                            h_scr, c_scr, *, hidden_dim, block_t, unroll):
    """One grid step == `block_t` timesteps for one batch block."""
    s = pl.program_id(1)              # time-block index (serial / "arbitrary")

    # Initialize recurrent state from (h0, c0) at the first time block.
    @pl.when(s == 0)
    def _():
        h_scr[...] = h0_ref[...].astype(jnp.float32)
        c_scr[...] = c0_ref[...].astype(jnp.float32)

    whh = whh_ref[...]                # (H, 4H), resident across the block
    H = hidden_dim

    def step(t, carry):
        h, c = carry                  # f32 (block_b, H)
        # gates = precomputed (x_t @ W_ih^T + b) + h_prev @ W_hh^T
        gates = gx_ref[t] + jnp.dot(h.astype(whh.dtype), whh,
                                    preferred_element_type=jnp.float32)
        i_g = jax.nn.sigmoid(gates[:, 0 * H:1 * H])
        f_g = jax.nn.sigmoid(gates[:, 1 * H:2 * H])
        g_g = jnp.tanh(gates[:, 2 * H:3 * H])
        o_g = jax.nn.sigmoid(gates[:, 3 * H:4 * H])
        c_new = f_g * c + i_g * g_g
        h_new = o_g * jnp.tanh(c_new)
        hseq_ref[t] = h_new.astype(hseq_ref.dtype)
        return h_new, c_new

    h_fin, c_fin = lax.fori_loop(0, block_t, step,
                                 (h_scr[...], c_scr[...]), unroll=unroll)

    # Persist state across time blocks.
    h_scr[...] = h_fin
    c_scr[...] = c_fin

    @pl.when(s == pl.num_programs(1) - 1)
    def _():
        hn_ref[...] = h_fin.astype(hn_ref.dtype)
        cn_ref[...] = c_fin.astype(cn_ref.dtype)


def _pick_time_block(s, cap=16):
    t = min(s, cap)
    while t > 1 and s % t != 0:
        t -= 1
    return max(t, 1)


# ---------------------------------------------------------------------------
# Public forward
# ---------------------------------------------------------------------------
def lstm_model_forward(x, params, hidden=None, *, block_t=None, block_b=None,
                       matmul_dtype=jnp.float32):
    """Forward pass of LSTMModel.

    Args:
      x: f32[B, S, D_in]  (batch_first, as in the PyTorch module)
      params: dict with w_ih [4H, D_in], w_hh [4H, H], b_ih [4H], b_hh [4H],
              w_fc [O, H], b_fc [O]
      hidden: optional (h0, c0) each f32[1, B, H]; None -> zeros.
      matmul_dtype: dtype of matmul operands (use jnp.bfloat16 on v6e/v7x).

    Returns:
      (y f32[B, S, O], (h_n f32[1, B, H], c_n f32[1, B, H]))
    """
    B, S, D_in = x.shape
    H = params["w_hh"].shape[1]
    O = params["w_fc"].shape[0]

    if hidden is None:
        h0 = jnp.zeros((B, H), jnp.float32)
        c0 = jnp.zeros((B, H), jnp.float32)
    else:
        h0 = hidden[0][0].astype(jnp.float32)
        c0 = hidden[1][0].astype(jnp.float32)

    # nn.Dropout is identity in eval mode.
    # TODO(synk): PRNG-based dropout mask for training mode.

    # Pre-transpose weights so all kernels do plain (row x col) matmuls.
    w_ih_t = jnp.transpose(params["w_ih"]).astype(matmul_dtype)      # [D_in, 4H]
    w_hh_t = jnp.transpose(params["w_hh"]).astype(matmul_dtype)      # [H, 4H]
    b_all = (params["b_ih"] + params["b_hh"]).reshape(1, 4 * H).astype(jnp.float32)
    w_fc_t = jnp.transpose(params["w_fc"]).astype(matmul_dtype)      # [H, O]
    b_fc = params["b_fc"].reshape(1, O).astype(jnp.float32)

    # ---- Phase 1: input projection for ALL timesteps, one big matmul ------
    x_sbd = jnp.transpose(x, (1, 0, 2)).astype(matmul_dtype)         # [S, B, D]
    gates_x = _dense(x_sbd.reshape(S * B, D_in), w_ih_t, b_all)      # [S*B, 4H] f32
    gates_x = gates_x.reshape(S, B, 4 * H)

    # ---- Phase 2: blocked serial recurrence --------------------------------
    if block_t is None:
        block_t = _pick_time_block(S)
    if block_b is None:
        block_b = B                          # set < B to shard over v7x cores
    nt = S // block_t
    nb = B // block_b
    unroll = True if block_t <= 16 else 4

    kernel = functools.partial(_lstm_recurrence_kernel, hidden_dim=H,
                               block_t=block_t, unroll=unroll)

    h_seq, h_n, c_n = pl.pallas_call(
        kernel,
        out_shape=(
            jax.ShapeDtypeStruct((S, B, H), jnp.float32),
            jax.ShapeDtypeStruct((B, H), jnp.float32),
            jax.ShapeDtypeStruct((B, H), jnp.float32),
        ),
        grid_spec=pltpu.PrefetchScalarGridSpec(
            num_scalar_prefetch=0,
            grid=(nb, nt),
            in_specs=[
                pl.BlockSpec((block_t, block_b, 4 * H),
                             lambda b, s: (s, b, 0)),                # gates_x
                pl.BlockSpec((H, 4 * H), lambda b, s: (0, 0)),       # W_hh^T
                pl.BlockSpec((block_b, H), lambda b, s: (b, 0)),     # h0
                pl.BlockSpec((block_b, H), lambda b, s: (b, 0)),     # c0
            ],
            out_specs=[
                pl.BlockSpec((block_t, block_b, H),
                             lambda b, s: (s, b, 0)),                # h sequence
                pl.BlockSpec((block_b, H), lambda b, s: (b, 0)),     # h_n
                pl.BlockSpec((block_b, H), lambda b, s: (b, 0)),     # c_n
            ],
            scratch_shapes=[
                pltpu.VMEM((block_b, H), jnp.float32),               # h state
                pltpu.VMEM((block_b, H), jnp.float32),               # c state
            ],
        ),
        compiler_params=pltpu.CompilerParams(
            dimension_semantics=("parallel", "arbitrary"),
        ),
    )(gates_x, w_hh_t, h0, c0)

    # ---- Phase 3: FC head as one lane-dense epilogue matmul ----------------
    y2d = _dense(h_seq.reshape(S * B, H).astype(matmul_dtype), w_fc_t, b_fc)
    y = jnp.transpose(y2d.reshape(S, B, O), (1, 0, 2))               # [B, S, O]

    return y, (h_n[None], c_n[None])


# ---------------------------------------------------------------------------
# Pure-JAX reference mirroring torch.nn.LSTM + nn.Linear (eval mode)
# ---------------------------------------------------------------------------
def lstm_model_reference(x, params, hidden=None):
    B, S, D_in = x.shape
    H = params["w_hh"].shape[1]
    if hidden is None:
        h0 = jnp.zeros((B, H), jnp.float32)
        c0 = jnp.zeros((B, H), jnp.float32)
    else:
        h0, c0 = hidden[0][0], hidden[1][0]

    w_ih, w_hh = params["w_ih"], params["w_hh"]
    b = params["b_ih"] + params["b_hh"]

    def step(carry, x_t):
        h, c = carry
        gates = x_t @ w_ih.T + h @ w_hh.T + b
        i = jax.nn.sigmoid(gates[:, 0 * H:1 * H])
        f = jax.nn.sigmoid(gates[:, 1 * H:2 * H])
        g = jnp.tanh(gates[:, 2 * H:3 * H])
        o = jax.nn.sigmoid(gates[:, 3 * H:4 * H])
        c_new = f * c + i * g
        h_new = o * jnp.tanh(c_new)
        return (h_new, c_new), h_new

    (h_n, c_n), hs = jax.lax.scan(step, (h0, c0), jnp.transpose(x, (1, 0, 2)))
    hs = jnp.transpose(hs, (1, 0, 2))                       # [B, S, H]
    y = hs @ params["w_fc"].T + params["b_fc"]
    return y, (h_n[None], c_n[None])


def init_params(key, input_dim, hidden_dim, output_dim):
    """Deterministic init matching PyTorch's U(-1/sqrt(H), 1/sqrt(H)) shapes."""
    ks = jax.random.split(key, 6)
    k_lstm = 1.0 / jnp.sqrt(hidden_dim)
    k_fc = 1.0 / jnp.sqrt(hidden_dim)
    u = lambda k, shape, b: jax.random.uniform(k, shape, jnp.float32, -b, b)
    return {
        "w_ih": u(ks[0], (4 * hidden_dim, input_dim), k_lstm),
        "w_hh": u(ks[1], (4 * hidden_dim, hidden_dim), k_lstm),
        "b_ih": u(ks[2], (4 * hidden_dim,), k_lstm),
        "b_hh": u(ks[3], (4 * hidden_dim,), k_lstm),
        "w_fc": u(ks[4], (output_dim, hidden_dim), k_fc),
        "b_fc": u(ks[5], (output_dim,), k_fc),
    }


if __name__ == "__main__":
    B, S, D_in, H, O = 2, 8, 8, 32, 4

    key = jax.random.PRNGKey(0)
    k_x, k_p, k_h, k_c = jax.random.split(key, 4)
    x = jax.random.normal(k_x, (B, S, D_in), jnp.float32)
    params = init_params(k_p, D_in, H, O)

    # --- Case 1: hidden=None (zeros) ---
    y, (h_n, c_n) = lstm_model_forward(x, params, hidden=None)
    y = jax.block_until_ready(y)
    h_n = jax.block_until_ready(h_n)
    c_n = jax.block_until_ready(c_n)

    y_ref, (h_ref, c_ref) = lstm_model_reference(x, params, hidden=None)
    assert y.shape == (B, S, O)
    assert h_n.shape == (1, B, H) and c_n.shape == (1, B, H)
    assert jnp.allclose(y, y_ref, atol=1e-5, rtol=1e-5)
    assert jnp.allclose(h_n, h_ref, atol=1e-5, rtol=1e-5)
    assert jnp.allclose(c_n, c_ref, atol=1e-5, rtol=1e-5)

    # --- Case 2: user-provided initial hidden state ---
    h0 = jax.random.normal(k_h, (1, B, H), jnp.float32)
    c0 = jax.random.normal(k_c, (1, B, H), jnp.float32)
    y2, (h_n2, c_n2) = lstm_model_forward(x, params, hidden=(h0, c0))
    y2 = jax.block_until_ready(y2)
    y2_ref, (h2_ref, c2_ref) = lstm_model_reference(x, params, hidden=(h0, c0))
    assert jnp.allclose(y2, y2_ref, atol=1e-5, rtol=1e-5)
    assert jnp.allclose(h_n2, h2_ref, atol=1e-5, rtol=1e-5)
    assert jnp.allclose(c_n2, c2_ref, atol=1e-5, rtol=1e-5)

    print("KERNEL_OK")
</pallas_src>

<mosaic_0001>
module attributes {stable_mosaic.version = 11 : i64} {
  func.func @_dense_kernel(%arg0: memref<16x8xf32, #tpu.memory_space<vmem>>, %arg1: memref<8x128xf32, #tpu.memory_space<vmem>>, %arg2: memref<1x128xf32, #tpu.memory_space<vmem>>, %arg3: memref<16x128xf32, #tpu.memory_space<vmem>>) attributes {dimension_semantics = [], scalar_prefetch = 0 : i64, scratch_operands = 0 : i64, tpu.core_type = #tpu.core_type<tc>} {
    %c0 = arith.constant 0 : index
    %c0_0 = arith.constant 0 : index
    %0 = vector.load %arg0[%c0, %c0_0] : memref<16x8xf32, #tpu.memory_space<vmem>>, vector<16x8xf32>
    %c0_1 = arith.constant 0 : index
    %c0_2 = arith.constant 0 : index
    %1 = vector.load %arg1[%c0_1, %c0_2] : memref<8x128xf32, #tpu.memory_space<vmem>>, vector<8x128xf32>
    %cst = arith.constant dense<0.000000e+00> : vector<16x128xf32>
    %2 = tpu.matmul %0, %1, %cst {dimension_numbers = #tpu.dot_dimension_numbers<[1], [0], [0], [1], [0, 0, 1, 1], [], []>} : vector<16x8xf32>, vector<8x128xf32>, vector<16x128xf32> -> vector<16x128xf32>
    %c0_3 = arith.constant 0 : index
    %c0_4 = arith.constant 0 : index
    %3 = vector.load %arg2[%c0_3, %c0_4] : memref<1x128xf32, #tpu.memory_space<vmem>>, vector<1x128xf32>
    %4 = vector.broadcast %3 : vector<1x128xf32> to vector<16x128xf32>
    %5 = arith.addf %2, %4 : vector<16x128xf32>
    %c0_5 = arith.constant 0 : index
    %c0_6 = arith.constant 0 : index
    %6 = vector.load %arg3[%c0_5, %c0_6] : memref<16x128xf32, #tpu.memory_space<vmem>>, vector<16x128xf32>
    tpu.vector_store %arg3[%c0_5, %c0_6], %5 {strides = array<i32>} : memref<16x128xf32, #tpu.memory_space<vmem>>, vector<16x128xf32>,
    return
  }
}

</mosaic_0001>

<llo_original>
// kernel: tpu_custom_call.1
$region0: #{tpu_custom_call.1}
  #allocation0 [shape = 'u32[]', space=smem, size = 0x4, offset = 0x4, fixed_abs, tag = 'smem constant byte address 0x4 - core index']
  #allocation1 [shape = 'u32[144,128]{1,0:T(1,128)}', space=vmem, size = 0x12000, scoped, tag = 'internal scratch']
  %s0 = inlined_call_operand.vmem [shape: f32[16,8], index: 0, kind: input, shape index: {}]
  %s1 = inlined_call_operand.vmem [shape: f32[8,128], index: 1, kind: input, shape index: {}]
  %s2 = inlined_call_operand.vmem [shape: f32[1,128], index: 2, kind: input, shape index: {}]
  %s3 = inlined_call_operand.hbm [shape: f32[16,128], index: 3, kind: output, shape index: {}]
  %s4 = sld [smem:[#allocation0]]
  $region22: #{tpu_custom_call.1} parent=0
    _
  %s6 = ssub.s32 1, %s4
  %s7 = scalar_select 0, %s6, %s4
  $region1: #{tpu_custom_call.1} parent=0
    #allocation2 [shape = 'u8[8192]{0}', space=vmem, size = 0x2000, scoped, tag = 'output window, operand 0, single buffered']
    #allocation3 [shape = 's32[1]{0}', space=sflag, size = 0x4, scoped, tag = 'scoped memory for tpu_custom_call.1']
    %8 = vsyncpa [#allocation3], 0
    // Predicated region
    $region2: #{tpu_custom_call.1} parent=1 // pred_check
      _
    $region3: #{tpu_custom_call.1} parent=1 // pred_check_branch
      %10 = sbr.rel (0) target = $region5
    $region4: #{tpu_custom_call.1} parent=1 // pred_region
      _
    $region5: #{tpu_custom_call.1} parent=1 // pred_fallthru
      _
    // Predicated region
    $region6: #{tpu_custom_call.1} parent=1 // pred_check
      _
    $region7: #{tpu_custom_call.1} parent=1 // pred_check_branch
      %12 = sbr.rel (0) target = $region9
    $region8: #{tpu_custom_call.1} parent=1 // pred_region
      _
    $region9: #{tpu_custom_call.1} parent=1 // pred_fallthru
      _
    // Predicated region
    $region10: #{tpu_custom_call.1} parent=1 // pred_check
      _
    $region11: #{tpu_custom_call.1} parent=1 // pred_check_branch
      %14 = sbr.rel (0) target = $region13
    $region12: #{tpu_custom_call.1} parent=1 // pred_region
      _
    $region13: #{tpu_custom_call.1} parent=1 // pred_fallthru
      _
    %v15 = vld [vmem:[%s0] sm:$0xff]
    %v16 = vld [vmem:[%s0 + $0x8] sm:$0xff]
    %v17 = vld [vmem:[%s1] sm:$0xff]
    %v18 = vld [vmem:[%s2] sm:$0x1]
    %v20 = vlaneseq
    %v21 = vshrl.u32 %v20, 7
    %v22 = vsub.s32 0, %v21
    %v23 = vrot.slane %v18, %v22
    %vm25 = vcmask 64512
    %v27 = vsel %vm25, %v15, 0
    %v30 = vsel %vm25, %v16, 0
    %32 = vmatprep.subr.mxu0 0.0
    %33 = vmatpush1.msra.mxu0 %v17
    %34 = vmatprep.subr.mxu0 0.0
    %35 = vmatpush1.msra.mxu0 0.0
    %36 = vmatprep.subr.mxu0 0.0
    %37 = vmatpush1.msra.mxu0 0.0
    %38 = vmatprep.subr.mxu0 0.0
    %39 = vmatpush1.msra.mxu0 0.0
    %40 = vmatprep.subr.mxu0 0.0
    %41 = vmatpush1.msra.mxu0 0.0
    %42 = vmatprep.subr.mxu0 0.0
    %43 = vmatpush1.msra.mxu0 0.0
    %44 = vmatprep.subr.mxu0 0.0
    %45 = vmatpush1.msra.mxu0 0.0
    %46 = vmatprep.subr.mxu0 0.0
    %47 = vmatpush1.msra.mxu0 0.0
    %48 = vmatprep.subr.mxu0 0.0
    %49 = vmatpush1.msra.mxu0 0.0
    %50 = vmatprep.subr.mxu0 0.0
    %51 = vmatpush1.msra.mxu0 0.0
    %52 = vmatprep.subr.mxu0 0.0
    %53 = vmatpush1.msra.mxu0 0.0
    %54 = vmatprep.subr.mxu0 0.0
    %55 = vmatpush1.msra.mxu0 0.0
    %56 = vmatprep.subr.mxu0 0.0
    %57 = vmatpush1.msra.mxu0 0.0
    %58 = vmatprep.subr.mxu0 0.0
    %59 = vmatpush1.msra.mxu0 0.0
    %60 = vmatprep.subr.mxu0 0.0
    %61 = vmatpush1.msra.mxu0 0.0
    %62 = vmatprep.subr.mxu0 0.0
    %63 = vmatpush1.msra.mxu0 0.0
    %64 = vmatprep.subr.mxu0 0.0
    %65 = vmatpush1.msra.mxu0 0.0
    %66 = vmatprep.subr.mxu0 0.0
    %67 = vmatpush1.msra.mxu0 0.0
    %68 = vmatprep.subr.mxu0 0.0
    %69 = vmatpush1.msra.mxu0 0.0
    %70 = vmatprep.subr.mxu0 0.0
    %71 = vmatpush1.msra.mxu0 0.0
    %72 = vmatprep.subr.mxu0 0.0
    %73 = vmatpush1.msra.mxu0 0.0
    %74 = vmatprep.subr.mxu0 0.0
    %75 = vmatpush1.msra.mxu0 0.0
    %76 = vmatprep.subr.mxu0 0.0
    %77 = vmatpush1.msra.mxu0 0.0
    %78 = vmatprep.subr.mxu0 0.0
    %79 = vmatpush1.msra.mxu0 0.0
    %80 = vmatprep.subr.mxu0 0.0
    %81 = vmatpush1.msra.mxu0 0.0
    %82 = vmatprep.subr.mxu0 0.0
    %83 = vmatpush1.msra.mxu0 0.0
    %84 = vmatprep.subr.mxu0 0.0
    %85 = vmatpush1.msra.mxu0 0.0
    %86 = vmatprep.subr.mxu0 0.0
    %87 = vmatpush1.msra.mxu0 0.0
    %88 = vmatprep.subr.mxu0 0.0
    %89 = vmatpush1.msra.mxu0 0.0
    %90 = vmatprep.subr.mxu0 0.0
    %91 = vmatpush1.msra.mxu0 0.0
    %92 = vmatprep.subr.mxu0 0.0
    %93 = vmatpush1.msra.mxu0 0.0
    %94 = vmatprep.subr.mxu0 0.0
    %95 = vmatpush1.msra.mxu0 0.0
    %96 = vmatprep.mubr.f32.mxu0 0.0
    %97 = vmatmul.mubr.f32.gmra.mrb[0].mxu0 %v27
    %v98 = vpop.f32.mrb[0].mxu0
    %v99 = vadd.f32 %v23, %v98
    %v100 = vpop.f32.mrb[0].mxu0
    %101 = vmatprep.mubr.f32.mxu0 0.0
    %102 = vmatmul.mubr.f32.gmra.mrb[0].mxu0 %v30
    %v103 = vpop.f32.mrb[0].mxu0
    %v104 = vadd.f32 %v23, %v103
    %v105 = vpop.f32.mrb[0].mxu0
    %106 = vdwg.mxu0
    %107 = vst [vmem:[#allocation2] sm:$0xff] %v99
    %108 = vst [vmem:[#allocation2 + $0x8] sm:$0xff] %v104
    // Predicated region
    $region14: #{tpu_custom_call.1} parent=1 // pred_check
      _
    $region15: #{tpu_custom_call.1} parent=1 // pred_check_branch
      %110 = sbr.rel (0) target = $region17
    $region16: #{tpu_custom_call.1} parent=1 // pred_region
      %s112 = ssub.s32 256, 256
      %113 = vsyncadd [#allocation3], %s112
      %s114 = sshll.u32 [#allocation2], 4
      %s115 = int_to_ptr.vmem [resolvable:$true] %s114
      %120 = dma.vmem_to_hbm [thread:$0]  %s115, 256, %s3, [#allocation3], 128, 128, 8
    $region17: #{tpu_custom_call.1} parent=1 // pred_fallthru
      _
    // Predicated region
    $region18: #{tpu_custom_call.1} parent=1 // pred_check
      _
    $region19: #{tpu_custom_call.1} parent=1 // pred_check_branch
      %122 = sbr.rel (0) target = $region21
    $region20: #{tpu_custom_call.1} parent=1 // pred_region
      %123 = dma.done [#allocation3], 256
    $region21: #{tpu_custom_call.1} parent=1 // pred_fallthru
      _
    %124 = vsyncpa [#allocation3], 1

</llo_original>
